<compile_context>
chip_gen: v7x
topology: tpu7x:2x2x1
jax: 0.10.0
libtpu: 0.0.40
codegen_flags: <defaults>
</compile_context>

<pallas_src>
import jax
import jax.numpy as jnp
from jax.experimental import pallas as pl
from jax.experimental.pallas import tpu as pltpu

_LANE_CANDIDATES = (4096, 2048, 1024, 512, 256, 128)  # widest lane count that divides total
_TARGET_TILE_BYTES = 4 * 1024 * 1024                  # ~4 MiB per tile (16 MiB dbl-buffered in+out)
_SMALL_TOTAL = 16384                                  # below this, fused XLA max beats a kernel launch


def _clamp_min_kernel(x_ref, o_ref):
    # torch.clamp(x, min=-10, max=None) == max(x, -10)
    x = x_ref[...]
    o_ref[...] = jnp.maximum(x, jnp.asarray(-10, dtype=x.dtype))


def _block_rows(n_rows, block_cols, itemsize):
    """Rows per tile: ~4 MiB, multiple of 32 (covers f32/bf16/i8 sublane packing),
    or the full row extent (always a legal block dim)."""
    rows = max(1, _TARGET_TILE_BYTES // max(1, block_cols * itemsize))
    rows = max(32, (rows // 32) * 32)
    return n_rows if rows >= n_rows else rows


def _run_clamp(slab, block_rows, block_cols):
    n_rows, n_cols = slab.shape
    grid = (pl.cdiv(n_rows, block_rows), pl.cdiv(n_cols, block_cols))
    return pl.pallas_call(
        _clamp_min_kernel,
        out_shape=jax.ShapeDtypeStruct(slab.shape, slab.dtype),
        grid=grid,
        in_specs=[pl.BlockSpec((block_rows, block_cols), lambda i, j: (i, j))],
        out_specs=pl.BlockSpec((block_rows, block_cols), lambda i, j: (i, j)),
        compiler_params=pltpu.CompilerParams(
            # Purely elementwise -> every grid step independent; shards across
            # both v7x TensorCores, neutral on v5e/v6e.
            dimension_semantics=("parallel", "parallel"),
            # Room for 2x double-buffered 4 MiB tiles + compiler scratch on all
            # generations (v5e default scoped limit is only 16 MiB).
            vmem_limit_bytes=32 * 1024 * 1024,
        ),
    )(slab)


def cast_clamp_float_input_int_min(x):
    """clamp(x, min=-10) with zero extra HBM passes around the Pallas kernel."""
    orig_shape = x.shape
    total = x.size
    if total == 0:
        return x

    min_val = jnp.asarray(-10, dtype=x.dtype)  # int min cast to x.dtype (PyTorch semantics)

    if total <= _SMALL_TOTAL:
        # Tiny tensors: launch overhead >> one vreg of VPU work; XLA fuses this.
        return jnp.maximum(x, min_val)

    itemsize = x.dtype.itemsize

    # Path A: lane-dense zero-copy slab. reshape of a contiguous array is a
    # bitcast, so there is no pad, no copy, and every store is an unmasked vst.
    lanes = next((c for c in _LANE_CANDIDATES if total % c == 0), None)
    if lanes is not None:
        slab = x.reshape(total // lanes, lanes)
        br = _block_rows(total // lanes, lanes, itemsize)
        return _run_clamp(slab, br, lanes).reshape(orig_shape)

    # Path B: ragged total — tile the original 2-D view directly (merge leading
    # dims, zero-copy) and let Pallas mask the boundary blocks. No pad before,
    # no slice after the kernel.
    if x.ndim >= 2 and x.shape[-1] >= 128:
        n_cols = x.shape[-1]
        slab = x.reshape(-1, n_cols)
        if n_cols % 128 == 0:
            bc = min(n_cols, 2048)
        else:
            bc = min(512, (n_cols // 128) * 128)
        br = _block_rows(slab.shape[0], bc, itemsize)
        return _run_clamp(slab, br, bc).reshape(orig_shape)

    # Path C: no lane-friendly factorization (ragged 1-D / very narrow last dim).
    # Elementwise max in XLA is a single HBM pass — the same traffic the kernel
    # would generate — so don't pay pad/slice copies just to route through Pallas.
    return jnp.maximum(x, min_val)


if __name__ == "__main__":
    key = jax.random.PRNGKey(0)
    k0, k1, k2, k3 = jax.random.split(key, 4)

    # Matches get_example_inputs(): torch.randn(5, 3) * 20  (tiny -> fused fast path)
    x_small = jax.random.normal(k0, (5, 3), dtype=jnp.float32) * 20.0
    out_small = cast_clamp_float_input_int_min(x_small)
    jax.block_until_ready(out_small)
    assert out_small.shape == (5, 3) and out_small.dtype == jnp.float32
    assert jnp.array_equal(out_small, jnp.maximum(x_small, -10.0)), "mismatch on tiny path"

    # Lane-dense zero-copy Pallas path (total divisible by 4096, single tile).
    x_aligned = jax.random.normal(k1, (256, 384), dtype=jnp.float32) * 20.0
    out_aligned = cast_clamp_float_input_int_min(x_aligned)
    jax.block_until_ready(out_aligned)
    assert jnp.array_equal(out_aligned, jnp.maximum(x_aligned, -10.0)), "mismatch on aligned path"

    # Multi-tile Pallas path (grid > 1 along rows, masked boundary rows).
    x_multi = jax.random.normal(k2, (1280, 1024), dtype=jnp.float32) * 20.0
    out_multi = cast_clamp_float_input_int_min(x_multi)
    jax.block_until_ready(out_multi)
    assert jnp.array_equal(out_multi, jnp.maximum(x_multi, -10.0)), "mismatch on multi-tile path"

    # Ragged-total Pallas path (boundary column block masked, no pad/slice copies).
    x_ragged = jax.random.normal(k3, (133, 131), dtype=jnp.float32) * 20.0
    out_ragged = cast_clamp_float_input_int_min(x_ragged)
    jax.block_until_ready(out_ragged)
    assert jnp.array_equal(out_ragged, jnp.maximum(x_ragged, -10.0)), "mismatch on ragged path"

    print("KERNEL_OK")
</pallas_src>

<mosaic_0001>
module attributes {stable_mosaic.version = 11 : i64} {
  func.func @_clamp_min_kernel(%arg0: i32, %arg1: i32, %arg2: memref<24x4096xf32, #tpu.memory_space<vmem>>, %arg3: memref<24x4096xf32, #tpu.memory_space<vmem>>) attributes {dimension_semantics = [#tpu.dimension_semantics<parallel>, #tpu.dimension_semantics<parallel>], iteration_bounds = array<i64: 1, 1>, scalar_prefetch = 0 : i64, scratch_operands = 0 : i64, tpu.core_type = #tpu.core_type<tc>, window_params = [{transform_indices = @transform_0, window_bounds = array<i64: 24, 4096>}, {transform_indices = @transform_1, window_bounds = array<i64: 24, 4096>}]} {
    %c0 = arith.constant 0 : index
    %c0_0 = arith.constant 0 : index
    %0 = vector.load %arg2[%c0, %c0_0] : memref<24x4096xf32, #tpu.memory_space<vmem>>, vector<24x4096xf32>
    %cst = arith.constant -1.000000e+01 : f32
    %1 = vector.broadcast %cst : f32 to vector<24x4096xf32>
    %2 = arith.maximumf %0, %1 : vector<24x4096xf32>
    %c0_1 = arith.constant 0 : index
    %c0_2 = arith.constant 0 : index
    %3 = vector.load %arg3[%c0_1, %c0_2] : memref<24x4096xf32, #tpu.memory_space<vmem>>, vector<24x4096xf32>
    tpu.vector_store %arg3[%c0_1, %c0_2], %2 {strides = array<i32>} : memref<24x4096xf32, #tpu.memory_space<vmem>>, vector<24x4096xf32>,
    return
  }
  func.func @transform_0(%arg0: i32, %arg1: i32) -> (i32, i32) {
    %c0_i32 = arith.constant 0 : i32
    return %arg0, %arg1 : i32, i32
  }
  func.func @transform_1(%arg0: i32, %arg1: i32) -> (i32, i32) {
    %c0_i32 = arith.constant 0 : i32
    return %arg0, %arg1 : i32, i32
  }
}

</mosaic_0001>

<llo_original>
// kernel: tpu_custom_call.1
$region0: #{tpu_custom_call.1}
  #allocation0 [shape = 'u32[]', space=smem, size = 0x4, offset = 0x4, fixed_abs, tag = 'smem constant byte address 0x4 - core index']
  #allocation1 [shape = 'u32[144,128]{1,0:T(1,128)}', space=vmem, size = 0x12000, scoped, tag = 'internal scratch']
  %s0 = inlined_call_operand.hbm [shape: f32[24,4096], index: 0, kind: input, shape index: {}]
  %s1 = inlined_call_operand.hbm [shape: f32[24,4096], index: 1, kind: output, shape index: {}]
  %s2 = sld [smem:[#allocation0]]
  $region18: #{tpu_custom_call.1} parent=0
    _
  %s4 = ssub.s32 1, %s2
  %s5 = scalar_select 0, %s4, %s2
  $region1: #{tpu_custom_call.1} parent=0
    #allocation2 [shape = 'u8[393216]{0}', space=vmem, size = 0x60000, scoped, tag = 'input window, operand 0, single buffered']
    #allocation3 [shape = 's32[1]{0}', space=sflag, size = 0x4, scoped, tag = 'scoped memory for tpu_custom_call.1']
    #allocation4 [shape = 's32[1]{0}', space=sflag, size = 0x4, scoped, tag = 'scoped memory for tpu_custom_call.1']
    #allocation5 [shape = 'u8[393216]{0}', space=vmem, size = 0x60000, scoped, tag = 'output window, operand 0, single buffered']
    %6 = vsyncpa [#allocation3], 0
    %7 = vsyncpa [#allocation4], 0
    // Predicated region
    $region2: #{tpu_custom_call.1} parent=1 // pred_check
      _
    $region3: #{tpu_custom_call.1} parent=1 // pred_check_branch
      %9 = sbr.rel (0) target = $region5
    $region4: #{tpu_custom_call.1} parent=1 // pred_region
      %s11 = ssub.s32 12288, 12288
      %12 = vsyncadd [#allocation3], %s11
      %s13 = sshll.u32 [#allocation2], 4
      %s14 = int_to_ptr.vmem [resolvable:$true] %s13
      %19 = dma.hbm_to_vmem [thread:$0]  %s0, 12288, %s14, [#allocation3], 4096, 4096, 256
    $region5: #{tpu_custom_call.1} parent=1 // pred_fallthru
      _
    // Predicated region
    $region6: #{tpu_custom_call.1} parent=1 // pred_check
      _
    $region7: #{tpu_custom_call.1} parent=1 // pred_check_branch
      %21 = sbr.rel (0) target = $region9
    $region8: #{tpu_custom_call.1} parent=1 // pred_region
      %22 = dma.done [#allocation3], 12288
    $region9: #{tpu_custom_call.1} parent=1 // pred_fallthru
      _
    %v23 = vld [vmem:[#allocation2] sm:$0xff]
    %v24 = vld [vmem:[#allocation2 + $0x8] sm:$0xff]
    %v25 = vld [vmem:[#allocation2 + $0x10] sm:$0xff]
    %v26 = vld [vmem:[#allocation2 + $0x18] sm:$0xff]
    %v27 = vld [vmem:[#allocation2 + $0x20] sm:$0xff]
    %v28 = vld [vmem:[#allocation2 + $0x28] sm:$0xff]
    %v29 = vld [vmem:[#allocation2 + $0x30] sm:$0xff]
    %v30 = vld [vmem:[#allocation2 + $0x38] sm:$0xff]
    %v31 = vld [vmem:[#allocation2 + $0x40] sm:$0xff]
    %v32 = vld [vmem:[#allocation2 + $0x48] sm:$0xff]
    %v33 = vld [vmem:[#allocation2 + $0x50] sm:$0xff]
    %v34 = vld [vmem:[#allocation2 + $0x58] sm:$0xff]
    %v35 = vld [vmem:[#allocation2 + $0x60] sm:$0xff]
    %v36 = vld [vmem:[#allocation2 + $0x68] sm:$0xff]
    %v37 = vld [vmem:[#allocation2 + $0x70] sm:$0xff]
    %v38 = vld [vmem:[#allocation2 + $0x78] sm:$0xff]
    %v39 = vld [vmem:[#allocation2 + $0x80] sm:$0xff]
    %v40 = vld [vmem:[#allocation2 + $0x88] sm:$0xff]
    %v41 = vld [vmem:[#allocation2 + $0x90] sm:$0xff]
    %v42 = vld [vmem:[#allocation2 + $0x98] sm:$0xff]
    %v43 = vld [vmem:[#allocation2 + $0xa0] sm:$0xff]
    %v44 = vld [vmem:[#allocation2 + $0xa8] sm:$0xff]
    %v45 = vld [vmem:[#allocation2 + $0xb0] sm:$0xff]
    %v46 = vld [vmem:[#allocation2 + $0xb8] sm:$0xff]
    %v47 = vld [vmem:[#allocation2 + $0xc0] sm:$0xff]
    %v48 = vld [vmem:[#allocation2 + $0xc8] sm:$0xff]
    %v49 = vld [vmem:[#allocation2 + $0xd0] sm:$0xff]
    %v50 = vld [vmem:[#allocation2 + $0xd8] sm:$0xff]
    %v51 = vld [vmem:[#allocation2 + $0xe0] sm:$0xff]
    %v52 = vld [vmem:[#allocation2 + $0xe8] sm:$0xff]
    %v53 = vld [vmem:[#allocation2 + $0xf0] sm:$0xff]
    %v54 = vld [vmem:[#allocation2 + $0xf8] sm:$0xff]
    %v55 = vld [vmem:[#allocation2 + $0x100] sm:$0xff]
    %v56 = vld [vmem:[#allocation2 + $0x108] sm:$0xff]
    %v57 = vld [vmem:[#allocation2 + $0x110] sm:$0xff]
    %v58 = vld [vmem:[#allocation2 + $0x118] sm:$0xff]
    %v59 = vld [vmem:[#allocation2 + $0x120] sm:$0xff]
    %v60 = vld [vmem:[#allocation2 + $0x128] sm:$0xff]
    %v61 = vld [vmem:[#allocation2 + $0x130] sm:$0xff]
    %v62 = vld [vmem:[#allocation2 + $0x138] sm:$0xff]
    %v63 = vld [vmem:[#allocation2 + $0x140] sm:$0xff]
    %v64 = vld [vmem:[#allocation2 + $0x148] sm:$0xff]
    %v65 = vld [vmem:[#allocation2 + $0x150] sm:$0xff]
    %v66 = vld [vmem:[#allocation2 + $0x158] sm:$0xff]
    %v67 = vld [vmem:[#allocation2 + $0x160] sm:$0xff]
    %v68 = vld [vmem:[#allocation2 + $0x168] sm:$0xff]
    %v69 = vld [vmem:[#allocation2 + $0x170] sm:$0xff]
    %v70 = vld [vmem:[#allocation2 + $0x178] sm:$0xff]
    %v71 = vld [vmem:[#allocation2 + $0x180] sm:$0xff]
    %v72 = vld [vmem:[#allocation2 + $0x188] sm:$0xff]
    %v73 = vld [vmem:[#allocation2 + $0x190] sm:$0xff]
    %v74 = vld [vmem:[#allocation2 + $0x198] sm:$0xff]
    %v75 = vld [vmem:[#allocation2 + $0x1a0] sm:$0xff]
    %v76 = vld [vmem:[#allocation2 + $0x1a8] sm:$0xff]
    %v77 = vld [vmem:[#allocation2 + $0x1b0] sm:$0xff]
    %v78 = vld [vmem:[#allocation2 + $0x1b8] sm:$0xff]
    %v79 = vld [vmem:[#allocation2 + $0x1c0] sm:$0xff]
    %v80 = vld [vmem:[#allocation2 + $0x1c8] sm:$0xff]
    %v81 = vld [vmem:[#allocation2 + $0x1d0] sm:$0xff]
    %v82 = vld [vmem:[#allocation2 + $0x1d8] sm:$0xff]
    %v83 = vld [vmem:[#allocation2 + $0x1e0] sm:$0xff]
    %v84 = vld [vmem:[#allocation2 + $0x1e8] sm:$0xff]
    %v85 = vld [vmem:[#allocation2 + $0x1f0] sm:$0xff]
    %v86 = vld [vmem:[#allocation2 + $0x1f8] sm:$0xff]
    %v87 = vld [vmem:[#allocation2 + $0x200] sm:$0xff]
    %v88 = vld [vmem:[#allocation2 + $0x208] sm:$0xff]
    %v89 = vld [vmem:[#allocation2 + $0x210] sm:$0xff]
    %v90 = vld [vmem:[#allocation2 + $0x218] sm:$0xff]
    %v91 = vld [vmem:[#allocation2 + $0x220] sm:$0xff]
    %v92 = vld [vmem:[#allocation2 + $0x228] sm:$0xff]
    %v93 = vld [vmem:[#allocation2 + $0x230] sm:$0xff]
    %v94 = vld [vmem:[#allocation2 + $0x238] sm:$0xff]
    %v95 = vld [vmem:[#allocation2 + $0x240] sm:$0xff]
    %v96 = vld [vmem:[#allocation2 + $0x248] sm:$0xff]
    %v97 = vld [vmem:[#allocation2 + $0x250] sm:$0xff]
    %v98 = vld [vmem:[#allocation2 + $0x258] sm:$0xff]
    %v99 = vld [vmem:[#allocation2 + $0x260] sm:$0xff]
    %v100 = vld [vmem:[#allocation2 + $0x268] sm:$0xff]
    %v101 = vld [vmem:[#allocation2 + $0x270] sm:$0xff]
    %v102 = vld [vmem:[#allocation2 + $0x278] sm:$0xff]
    %v103 = vld [vmem:[#allocation2 + $0x280] sm:$0xff]
    %v104 = vld [vmem:[#allocation2 + $0x288] sm:$0xff]
    %v105 = vld [vmem:[#allocation2 + $0x290] sm:$0xff]
    %v106 = vld [vmem:[#allocation2 + $0x298] sm:$0xff]
    %v107 = vld [vmem:[#allocation2 + $0x2a0] sm:$0xff]
    %v108 = vld [vmem:[#allocation2 + $0x2a8] sm:$0xff]
    %v109 = vld [vmem:[#allocation2 + $0x2b0] sm:$0xff]
    %v110 = vld [vmem:[#allocation2 + $0x2b8] sm:$0xff]
    %v111 = vld [vmem:[#allocation2 + $0x2c0] sm:$0xff]
    %v112 = vld [vmem:[#allocation2 + $0x2c8] sm:$0xff]
    %v113 = vld [vmem:[#allocation2 + $0x2d0] sm:$0xff]
    %v114 = vld [vmem:[#allocation2 + $0x2d8] sm:$0xff]
    %v115 = vld [vmem:[#allocation2 + $0x2e0] sm:$0xff]
    %v116 = vld [vmem:[#allocation2 + $0x2e8] sm:$0xff]
    %v117 = vld [vmem:[#allocation2 + $0x2f0] sm:$0xff]
    %v118 = vld [vmem:[#allocation2 + $0x2f8] sm:$0xff]
    %v119 = vmax.f32 %v23, -10.0
    %v120 = vmax.f32 %v24, -10.0
    %v121 = vmax.f32 %v25, -10.0
    %v122 = vmax.f32 %v26, -10.0
    %v123 = vmax.f32 %v27, -10.0
    %v124 = vmax.f32 %v28, -10.0
    %v125 = vmax.f32 %v29, -10.0
    %v126 = vmax.f32 %v30, -10.0
    %v127 = vmax.f32 %v31, -10.0
    %v128 = vmax.f32 %v32, -10.0
    %v129 = vmax.f32 %v33, -10.0
    %v130 = vmax.f32 %v34, -10.0
    %v131 = vmax.f32 %v35, -10.0
    %v132 = vmax.f32 %v36, -10.0
    %v133 = vmax.f32 %v37, -10.0
    %v134 = vmax.f32 %v38, -10.0
    %v135 = vmax.f32 %v39, -10.0
    %v136 = vmax.f32 %v40, -10.0
    %v137 = vmax.f32 %v41, -10.0
    %v138 = vmax.f32 %v42, -10.0
    %v139 = vmax.f32 %v43, -10.0
    %v140 = vmax.f32 %v44, -10.0
    %v141 = vmax.f32 %v45, -10.0
    %v142 = vmax.f32 %v46, -10.0
    %v143 = vmax.f32 %v47, -10.0
    %v144 = vmax.f32 %v48, -10.0
    %v145 = vmax.f32 %v49, -10.0
    %v146 = vmax.f32 %v50, -10.0
    %v147 = vmax.f32 %v51, -10.0
    %v148 = vmax.f32 %v52, -10.0
    %v149 = vmax.f32 %v53, -10.0
    %v150 = vmax.f32 %v54, -10.0
    %v151 = vmax.f32 %v55, -10.0
    %v152 = vmax.f32 %v56, -10.0
    %v153 = vmax.f32 %v57, -10.0
    %v154 = vmax.f32 %v58, -10.0
    %v155 = vmax.f32 %v59, -10.0
    %v156 = vmax.f32 %v60, -10.0
    %v157 = vmax.f32 %v61, -10.0
    %v158 = vmax.f32 %v62, -10.0
    %v159 = vmax.f32 %v63, -10.0
    %v160 = vmax.f32 %v64, -10.0
    %v161 = vmax.f32 %v65, -10.0
    %v162 = vmax.f32 %v66, -10.0
    %v163 = vmax.f32 %v67, -10.0
    %v164 = vmax.f32 %v68, -10.0
    %v165 = vmax.f32 %v69, -10.0
    %v166 = vmax.f32 %v70, -10.0
    %v167 = vmax.f32 %v71, -10.0
    %v168 = vmax.f32 %v72, -10.0
    %v169 = vmax.f32 %v73, -10.0
    %v170 = vmax.f32 %v74, -10.0
    %v171 = vmax.f32 %v75, -10.0
    %v172 = vmax.f32 %v76, -10.0
    %v173 = vmax.f32 %v77, -10.0
    %v174 = vmax.f32 %v78, -10.0
    %v175 = vmax.f32 %v79, -10.0
    %v176 = vmax.f32 %v80, -10.0
    %v177 = vmax.f32 %v81, -10.0
    %v178 = vmax.f32 %v82, -10.0
    %v179 = vmax.f32 %v83, -10.0
    %v180 = vmax.f32 %v84, -10.0
    %v181 = vmax.f32 %v85, -10.0
    %v182 = vmax.f32 %v86, -10.0
    %v183 = vmax.f32 %v87, -10.0
    %v184 = vmax.f32 %v88, -10.0
    %v185 = vmax.f32 %v89, -10.0
    %v186 = vmax.f32 %v90, -10.0
    %v187 = vmax.f32 %v91, -10.0
    %v188 = vmax.f32 %v92, -10.0
    %v189 = vmax.f32 %v93, -10.0
    %v190 = vmax.f32 %v94, -10.0
    %v191 = vmax.f32 %v95, -10.0
    %v192 = vmax.f32 %v96, -10.0
    %v193 = vmax.f32 %v97, -10.0
    %v194 = vmax.f32 %v98, -10.0
    %v195 = vmax.f32 %v99, -10.0
    %v196 = vmax.f32 %v100, -10.0
    %v197 = vmax.f32 %v101, -10.0
    %v198 = vmax.f32 %v102, -10.0
    %v199 = vmax.f32 %v103, -10.0
    %v200 = vmax.f32 %v104, -10.0
    %v201 = vmax.f32 %v105, -10.0
    %v202 = vmax.f32 %v106, -10.0
    %v203 = vmax.f32 %v107, -10.0
    %v204 = vmax.f32 %v108, -10.0
    %v205 = vmax.f32 %v109, -10.0
    %v206 = vmax.f32 %v110, -10.0
    %v207 = vmax.f32 %v111, -10.0
    %v208 = vmax.f32 %v112, -10.0
    %v209 = vmax.f32 %v113, -10.0
    %v210 = vmax.f32 %v114, -10.0
    %v211 = vmax.f32 %v115, -10.0
    %v212 = vmax.f32 %v116, -10.0
    %v213 = vmax.f32 %v117, -10.0
    %v214 = vmax.f32 %v118, -10.0
    %215 = vst [vmem:[#allocation5] sm:$0xff] %v119
    %216 = vst [vmem:[#allocation5 + $0x8] sm:$0xff] %v120
    %217 = vst [vmem:[#allocation5 + $0x10] sm:$0xff] %v121
    %218 = vst [vmem:[#allocation5 + $0x18] sm:$0xff] %v122
    %219 = vst [vmem:[#allocation5 + $0x20] sm:$0xff] %v123
    %220 = vst [vmem:[#allocation5 + $0x28] sm:$0xff] %v124
    %221 = vst [vmem:[#allocation5 + $0x30] sm:$0xff] %v125
    %222 = vst [vmem:[#allocation5 + $0x38] sm:$0xff] %v126
    %223 = vst [vmem:[#allocation5 + $0x40] sm:$0xff] %v127
    %224 = vst [vmem:[#allocation5 + $0x48] sm:$0xff] %v128
    %225 = vst [vmem:[#allocation5 + $0x50] sm:$0xff] %v129
    %226 = vst [vmem:[#allocation5 + $0x58] sm:$0xff] %v130
    %227 = vst [vmem:[#allocation5 + $0x60] sm:$0xff] %v131
    %228 = vst [vmem:[#allocation5 + $0x68] sm:$0xff] %v132
    %229 = vst [vmem:[#allocation5 + $0x70] sm:$0xff] %v133
    %230 = vst [vmem:[#allocation5 + $0x78] sm:$0xff] %v134
    %231 = vst [vmem:[#allocation5 + $0x80] sm:$0xff] %v135
    %232 = vst [vmem:[#allocation5 + $0x88] sm:$0xff] %v136
    %233 = vst [vmem:[#allocation5 + $0x90] sm:$0xff] %v137
    %234 = vst [vmem:[#allocation5 + $0x98] sm:$0xff] %v138
    %235 = vst [vmem:[#allocation5 + $0xa0] sm:$0xff] %v139
    %236 = vst [vmem:[#allocation5 + $0xa8] sm:$0xff] %v140
    %237 = vst [vmem:[#allocation5 + $0xb0] sm:$0xff] %v141
    %238 = vst [vmem:[#allocation5 + $0xb8] sm:$0xff] %v142
    %239 = vst [vmem:[#allocation5 + $0xc0] sm:$0xff] %v143
    %240 = vst [vmem:[#allocation5 + $0xc8] sm:$0xff] %v144
    %241 = vst [vmem:[#allocation5 + $0xd0] sm:$0xff] %v145
    %242 = vst [vmem:[#allocation5 + $0xd8] sm:$0xff] %v146
    %243 = vst [vmem:[#allocation5 + $0xe0] sm:$0xff] %v147
    %244 = vst [vmem:[#allocation5 + $0xe8] sm:$0xff] %v148
    %245 = vst [vmem:[#allocation5 + $0xf0] sm:$0xff] %v149
    %246 = vst [vmem:[#allocation5 + $0xf8] sm:$0xff] %v150
    %247 = vst [vmem:[#allocation5 + $0x100] sm:$0xff] %v151
    %248 = vst [vmem:[#allocation5 + $0x108] sm:$0xff] %v152
    %249 = vst [vmem:[#allocation5 + $0x110] sm:$0xff] %v153
    %250 = vst [vmem:[#allocation5 + $0x118] sm:$0xff] %v154
    %251 = vst [vmem:[#allocation5 + $0x120] sm:$0xff] %v155
    %252 = vst [vmem:[#allocation5 + $0x128] sm:$0xff] %v156
    %253 = vst [vmem:[#allocation5 + $0x130] sm:$0xff] %v157
    %254 = vst [vmem:[#allocation5 + $0x138] sm:$0xff] %v158
    %255 = vst [vmem:[#allocation5 + $0x140] sm:$0xff] %v159
    %256 = vst [vmem:[#allocation5 + $0x148] sm:$0xff] %v160
    %257 = vst [vmem:[#allocation5 + $0x150] sm:$0xff] %v161
    %258 = vst [vmem:[#allocation5 + $0x158] sm:$0xff] %v162
    %259 = vst [vmem:[#allocation5 + $0x160] sm:$0xff] %v163
    %260 = vst [vmem:[#allocation5 + $0x168] sm:$0xff] %v164
    %261 = vst [vmem:[#allocation5 + $0x170] sm:$0xff] %v165
    %262 = vst [vmem:[#allocation5 + $0x178] sm:$0xff] %v166
    %263 = vst [vmem:[#allocation5 + $0x180] sm:$0xff] %v167
    %264 = vst [vmem:[#allocation5 + $0x188] sm:$0xff] %v168
    %265 = vst [vmem:[#allocation5 + $0x190] sm:$0xff] %v169
    %266 = vst [vmem:[#allocation5 + $0x198] sm:$0xff] %v170
    %267 = vst [vmem:[#allocation5 + $0x1a0] sm:$0xff] %v171
    %268 = vst [vmem:[#allocation5 + $0x1a8] sm:$0xff] %v172
    %269 = vst [vmem:[#allocation5 + $0x1b0] sm:$0xff] %v173
    %270 = vst [vmem:[#allocation5 + $0x1b8] sm:$0xff] %v174
    %271 = vst [vmem:[#allocation5 + $0x1c0] sm:$0xff] %v175
    %272 = vst [vmem:[#allocation5 + $0x1c8] sm:$0xff] %v176
    %273 = vst [vmem:[#allocation5 + $0x1d0] sm:$0xff] %v177
    %274 = vst [vmem:[#allocation5 + $0x1d8] sm:$0xff] %v178
    %275 = vst [vmem:[#allocation5 + $0x1e0] sm:$0xff] %v179
    %276 = vst [vmem:[#allocation5 + $0x1e8] sm:$0xff] %v180
    %277 = vst [vmem:[#allocation5 + $0x1f0] sm:$0xff] %v181
    %278 = vst [vmem:[#allocation5 + $0x1f8] sm:$0xff] %v182
    %279 = vst [vmem:[#allocation5 + $0x200] sm:$0xff] %v183
    %280 = vst [vmem:[#allocation5 + $0x208] sm:$0xff] %v184
    %281 = vst [vmem:[#allocation5 + $0x210] sm:$0xff] %v185
    %282 = vst [vmem:[#allocation5 + $0x218] sm:$0xff] %v186
    %283 = vst [vmem:[#allocation5 + $0x220] sm:$0xff] %v187
    %284 = vst [vmem:[#allocation5 + $0x228] sm:$0xff] %v188
    %285 = vst [vmem:[#allocation5 + $0x230] sm:$0xff] %v189
    %286 = vst [vmem:[#allocation5 + $0x238] sm:$0xff] %v190
    %287 = vst [vmem:[#allocation5 + $0x240] sm:$0xff] %v191
    %288 = vst [vmem:[#allocation5 + $0x248] sm:$0xff] %v192
    %289 = vst [vmem:[#allocation5 + $0x250] sm:$0xff] %v193
    %290 = vst [vmem:[#allocation5 + $0x258] sm:$0xff] %v194
    %291 = vst [vmem:[#allocation5 + $0x260] sm:$0xff] %v195
    %292 = vst [vmem:[#allocation5 + $0x268] sm:$0xff] %v196
    %293 = vst [vmem:[#allocation5 + $0x270] sm:$0xff] %v197
    %294 = vst [vmem:[#allocation5 + $0x278] sm:$0xff] %v198
    %295 = vst [vmem:[#allocation5 + $0x280] sm:$0xff] %v199
    %296 = vst [vmem:[#allocation5 + $0x288] sm:$0xff] %v200
    %297 = vst [vmem:[#allocation5 + $0x290] sm:$0xff] %v201
    %298 = vst [vmem:[#allocation5 + $0x298] sm:$0xff] %v202
    %299 = vst [vmem:[#allocation5 + $0x2a0] sm:$0xff] %v203
    %300 = vst [vmem:[#allocation5 + $0x2a8] sm:$0xff] %v204
    %301 = vst [vmem:[#allocation5 + $0x2b0] sm:$0xff] %v205
    %302 = vst [vmem:[#allocation5 + $0x2b8] sm:$0xff] %v206
    %303 = vst [vmem:[#allocation5 + $0x2c0] sm:$0xff] %v207
    %304 = vst [vmem:[#allocation5 + $0x2c8] sm:$0xff] %v208
    %305 = vst [vmem:[#allocation5 + $0x2d0] sm:$0xff] %v209
    %306 = vst [vmem:[#allocation5 + $0x2d8] sm:$0xff] %v210
    %307 = vst [vmem:[#allocation5 + $0x2e0] sm:$0xff] %v211
    %308 = vst [vmem:[#allocation5 + $0x2e8] sm:$0xff] %v212
    %309 = vst [vmem:[#allocation5 + $0x2f0] sm:$0xff] %v213
    %310 = vst [vmem:[#allocation5 + $0x2f8] sm:$0xff] %v214
    // Predicated region
    $region10: #{tpu_custom_call.1} parent=1 // pred_check
      _
    $region11: #{tpu_custom_call.1} parent=1 // pred_check_branch
      %312 = sbr.rel (0) target = $region13
    $region12: #{tpu_custom_call.1} parent=1 // pred_region
      %s314 = ssub.s32 12288, 12288
      %315 = vsyncadd [#allocation4], %s314
      %s316 = sshll.u32 [#allocation5], 4
      %s317 = int_to_ptr.vmem [resolvable:$true] %s316
      %322 = dma.vmem_to_hbm [thread:$0]  %s317, 12288, %s1, [#allocation4], 4096, 4096, 256
    $region13: #{tpu_custom_call.1} parent=1 // pred_fallthru
      _
    // Predicated region
    $region14: #{tpu_custom_call.1} parent=1 // pred_check
      _
    $region15: #{tpu_custom_call.1} parent=1 // pred_check_branch
      %324 = sbr.rel (0) target = $region17
    $region16: #{tpu_custom_call.1} parent=1 // pred_region
      %325 = dma.done [#allocation4], 12288
    $region17: #{tpu_custom_call.1} parent=1 // pred_fallthru
      _
    %326 = vsyncpa [#allocation3], 1
    %327 = vsyncpa [#allocation4], 1

</llo_original>
